<compile_context>
chip_gen: v7x
topology: tpu7x:2x2x1
jax: 0.10.0
libtpu: 0.0.40
codegen_flags: <defaults>
</compile_context>

<pallas_src>
import jax
import jax.numpy as jnp
from jax.experimental import pallas as pl
from jax.experimental.pallas import tpu as pltpu

# ---------------- model config (small, consistent with the module) ----------------
B = 2                               # batch
N = 8                               # sequence length
C = 32                              # dim
NUM_HEADS = 4
HEAD_DIM = C // NUM_HEADS           # attn_head_dim=None -> dim // num_heads
ALL_HEAD_DIM = HEAD_DIM * NUM_HEADS
MLP_RATIO = 4.0
MLP_HIDDEN = int(C * MLP_RATIO)     # 128
SCALE = HEAD_DIM ** (-0.5)          # qk_scale=None
LN_EPS = 1e-5
INIT_VALUES = 1e-2                  # gamma_1 / gamma_2 init
BN = B * N                          # fused matmul rows
HB = NUM_HEADS * BN                 # stacked (head, batch*seq) rows
INV_SQRT2 = 0.7071067811865476

# -------- packed-operand layout (static sublane offsets) --------
# W32: every 32-lane matrix / mask stacked along sublanes, shape (480, 32).
OFF_QW = 0
OFF_KW = OFF_QW + C                      # 32
OFF_VW = OFF_KW + C                      # 64
OFF_PROJ = OFF_VW + C                    # 96   (block-sparse proj weight, 128 rows)
OFF_FC2 = OFF_PROJ + NUM_HEADS * ALL_HEAD_DIM   # 224
OFF_HMASK = OFF_FC2 + MLP_HIDDEN         # 352  ({0,1} head mask, 64 rows)
OFF_BBIAS = OFF_HMASK + HB               # 416  ({0,-1e30} batch bias, 64 rows)
W32_ROWS = OFF_BBIAS + HB                # 480

# W128: fc1 weight (32 rows, 128 lanes) + all row vectors, shape (48, 128).
ROW_LN1W, ROW_LN1B, ROW_QB, ROW_VB, ROW_PROJB, ROW_LN2W, ROW_LN2B, ROW_FC1B, ROW_FC2B = \
    range(C, C + 9)
W128_ROWS = 48                           # padded to a multiple of 8 sublanes


def _layernorm(x, w, b):
    mu = jnp.mean(x, axis=-1, keepdims=True)
    var = jnp.mean((x - mu) ** 2, axis=-1, keepdims=True)
    return (x - mu) * jax.lax.rsqrt(var + LN_EPS) * w + b


def _dot(a, b):
    # a @ b (contract last dim of a with first dim of b), f32 accumulate on MXU.
    return jax.lax.dot_general(
        a, b, (((1,), (0,)), ((), ())), preferred_element_type=jnp.float32)


def _dot_nt(a, b):
    # a @ b.T without materializing a transpose.
    return jax.lax.dot_general(
        a, b, (((1,), (1,)), ((), ())), preferred_element_type=jnp.float32)


def _erf(x):
    # Abramowitz & Stegun 7.1.26 rational approximation, |err| <= 1.5e-7.
    # Built from exp/div/mul/add/where only (guaranteed Mosaic lowering).
    a1, a2, a3, a4, a5 = 0.254829592, -0.284496736, 1.421413741, -1.453152027, 1.061405429
    p = 0.3275911
    ax = jnp.abs(x)
    t = 1.0 / (1.0 + p * ax)
    poly = ((((a5 * t + a4) * t + a3) * t + a2) * t + a1) * t
    y = 1.0 - poly * jnp.exp(-ax * ax)
    return jnp.where(x >= 0.0, y, -y)


def _gelu_exact(x):
    # Exact (erf-based) GELU, matching torch nn.GELU default.
    return 0.5 * x * (1.0 + _erf(x * INV_SQRT2))


def block_kernel(x_ref, w32_ref, w128_ref, o_ref):
    x = x_ref[...]                                            # (BN, C)

    # ---- unpack packed operands (static, aligned slices; no extra DMAs) ----
    qw = w32_ref[OFF_QW:OFF_QW + C, :]                        # (C, AH)   scale folded
    kw = w32_ref[OFF_KW:OFF_KW + C, :]                        # (C, AH)
    vw = w32_ref[OFF_VW:OFF_VW + C, :]                        # (C, AH)
    projw = w32_ref[OFF_PROJ:OFF_PROJ + NUM_HEADS * ALL_HEAD_DIM, :]   # (128, C) block-sparse, g1 folded
    fc2w = w32_ref[OFF_FC2:OFF_FC2 + MLP_HIDDEN, :]           # (128, C)  g2 folded
    hmask = w32_ref[OFF_HMASK:OFF_HMASK + HB, :]              # (64, AH)  {0,1}
    bbias = w32_ref[OFF_BBIAS:OFF_BBIAS + HB, 0:BN]           # (64, BN)  {0,-1e30}

    fc1w = w128_ref[0:C, :]                                   # (C, 128)
    ln1w = w128_ref[ROW_LN1W:ROW_LN1W + 1, 0:C]
    ln1b = w128_ref[ROW_LN1B:ROW_LN1B + 1, 0:C]
    qb = w128_ref[ROW_QB:ROW_QB + 1, 0:ALL_HEAD_DIM]          # scale folded
    vb = w128_ref[ROW_VB:ROW_VB + 1, 0:ALL_HEAD_DIM]
    projb = w128_ref[ROW_PROJB:ROW_PROJB + 1, 0:C]            # g1 folded
    ln2w = w128_ref[ROW_LN2W:ROW_LN2W + 1, 0:C]
    ln2b = w128_ref[ROW_LN2B:ROW_LN2B + 1, 0:C]
    fc1b = w128_ref[ROW_FC1B:ROW_FC1B + 1, :]                 # (1, 128)
    fc2b = w128_ref[ROW_FC2B:ROW_FC2B + 1, 0:C]               # g2 folded

    # ---- norm1 + attention ----
    h = _layernorm(x, ln1w, ln1b)                             # (BN, C)
    q = _dot(h, qw) + qb                                      # (BN, AH)
    k = _dot(h, kw)                                           # (BN, AH)  k has no bias
    v = _dot(h, vw) + vb                                      # (BN, AH)

    # Block-diagonal attention: stacked row index r = head * BN + (b * N + n).
    q_rep = jnp.concatenate([q] * NUM_HEADS, axis=0)          # (HB, AH)
    q_bd = q_rep * hmask                                      # zero cross-head channels (one vmul)

    s = _dot_nt(q_bd, k) + bbias                              # (HB, BN), cross-batch masked (one vadd)
    s = s - jnp.max(s, axis=-1, keepdims=True)
    p = jnp.exp(s)
    p = p / jnp.sum(p, axis=-1, keepdims=True)                # exact reciprocal (tolerance-safe)

    r = _dot(p, v)                                            # (HB, AH)
    # Relayout (H*BN, AH) -> (BN, H*AH): 4 aligned sublane slices + lane concat.
    r2 = jnp.concatenate(
        [r[hh * BN:(hh + 1) * BN, :] for hh in range(NUM_HEADS)], axis=1)   # (BN, 128)
    # Block-sparse proj weight does head selection + head sum + gamma_1 in one matmul.
    attn_out = _dot(r2, projw) + projb                        # (BN, C)
    x1 = x + attn_out                                         # residual 1

    # ---- norm2 + MLP ----
    h2 = _layernorm(x1, ln2w, ln2b)
    m = _dot(h2, fc1w) + fc1b                                 # (BN, MLP_HIDDEN)
    m = _gelu_exact(m)                                        # exact (erf) GELU, like nn.GELU
    m = _dot(m, fc2w) + fc2b                                  # (BN, C), gamma_2 folded in

    o_ref[...] = x1 + m                                       # residual 2


def prepare_params(p):
    """One-time parameter prep: transposes, qkv split, constant folding, mask
    precomputation and packing into two VMEM operands (W32, W128)."""
    g1 = p["gamma_1"]
    g2 = p["gamma_2"]
    qkv_w = p["qkv_w"]                                        # (3*AH, C), torch (out, in)

    qw = qkv_w[0:ALL_HEAD_DIM].T * SCALE                      # (C, AH), scale folded
    kw = qkv_w[ALL_HEAD_DIM:2 * ALL_HEAD_DIM].T
    vw = qkv_w[2 * ALL_HEAD_DIM:].T

    # Block-sparse proj weight: row (h*AH + c) = proj_w.T[c,:]*g1 if head(c)==h else 0.
    proj_t_g = p["proj_w"].T * g1[None, :]                    # (AH, C)
    proj_bd = jnp.zeros((NUM_HEADS * ALL_HEAD_DIM, C), jnp.float32)
    for hh in range(NUM_HEADS):
        lo, hi = hh * HEAD_DIM, (hh + 1) * HEAD_DIM
        proj_bd = proj_bd.at[hh * ALL_HEAD_DIM + lo:hh * ALL_HEAD_DIM + hi, :].set(
            proj_t_g[lo:hi, :])

    fc2_w_g = p["fc2_w"].T * g2[None, :]                      # (HID, C), gamma_2 folded

    # Precomputed masks (trace-time constants packed into W32).
    row_head = (jnp.arange(HB) // BN)[:, None]
    col_head = (jnp.arange(ALL_HEAD_DIM) // HEAD_DIM)[None, :]
    head_mask = (row_head == col_head).astype(jnp.float32)    # (HB, AH) in {0,1}
    row_b = ((jnp.arange(HB) % BN) // N)[:, None]
    col_b = (jnp.arange(BN) // N)[None, :]
    batch_bias = jnp.where(row_b == col_b, 0.0, -1e30).astype(jnp.float32)   # (HB, BN)
    batch_bias_pad = jnp.zeros((HB, C), jnp.float32).at[:, 0:BN].set(batch_bias)

    w32 = jnp.concatenate(
        [qw, kw, vw, proj_bd, fc2_w_g, head_mask, batch_bias_pad], axis=0)
    assert w32.shape == (W32_ROWS, C)

    def row128(v):
        r = jnp.zeros((1, MLP_HIDDEN), jnp.float32)
        return r.at[0, 0:v.shape[0]].set(v)

    fc1_w = p["fc1_w"].T                                      # (C, HID)
    rows = [
        row128(p["ln1_w"]), row128(p["ln1_b"]),
        row128(p["q_bias"] * SCALE), row128(p["v_bias"]),
        row128(p["proj_b"] * g1),
        row128(p["ln2_w"]), row128(p["ln2_b"]),
        row128(p["fc1_b"]),
        row128(p["fc2_b"] * g2),
    ]
    pad = jnp.zeros((W128_ROWS - C - len(rows), MLP_HIDDEN), jnp.float32)
    w128 = jnp.concatenate([fc1_w] + rows + [pad], axis=0)
    assert w128.shape == (W128_ROWS, MLP_HIDDEN)

    return w32.astype(jnp.float32), w128.astype(jnp.float32)


@jax.jit
def block_forward(x, w32, w128):
    """x: (B, N, C) float32. w32/w128: packed parameter operands (see prepare_params)."""
    x2 = x.reshape(BN, C)                                     # free row-major reshape
    # Single invocation, whole problem resident in VMEM (~70 KiB total).
    # Scale-up path: grow the fused row dim (target >=128 rows), add a leading grid
    # over row blocks with dimension_semantics=("parallel",) for v7x's 2 TCs, and tile
    # the MLP hidden dim if C/hidden grow to production ViT sizes.
    y = pl.pallas_call(
        block_kernel,
        out_shape=jax.ShapeDtypeStruct((BN, C), jnp.float32),
        in_specs=[
            pl.BlockSpec(memory_space=pltpu.MemorySpace.VMEM),
            pl.BlockSpec(memory_space=pltpu.MemorySpace.VMEM),
            pl.BlockSpec(memory_space=pltpu.MemorySpace.VMEM),
        ],
        out_specs=pl.BlockSpec(memory_space=pltpu.MemorySpace.VMEM),
    )(x2, w32, w128)
    return y.reshape(B, N, C)


# ---------------- pure-JAX reference (mirrors the PyTorch forward) ----------------
def block_reference(x, p):
    def ln(t, w, b):
        mu = t.mean(-1, keepdims=True)
        var = ((t - mu) ** 2).mean(-1, keepdims=True)
        return (t - mu) / jnp.sqrt(var + LN_EPS) * w + b

    h = ln(x, p["ln1_w"], p["ln1_b"])
    qkv_b = jnp.concatenate(
        [p["q_bias"], jnp.zeros_like(p["v_bias"]), p["v_bias"]])
    qkv = h @ p["qkv_w"].T + qkv_b                            # (B, N, 3*AH)
    qkv = qkv.reshape(B, N, 3, NUM_HEADS, HEAD_DIM).transpose(2, 0, 3, 1, 4)
    q, k, v = qkv[0], qkv[1], qkv[2]                          # (B, H, N, hd)
    q = q * SCALE
    attn = q @ jnp.swapaxes(k, -2, -1)
    attn = jax.nn.softmax(attn, axis=-1)
    o = (attn @ v).transpose(0, 2, 1, 3).reshape(B, N, ALL_HEAD_DIM)
    o = o @ p["proj_w"].T + p["proj_b"]
    x = x + p["gamma_1"] * o

    h2 = ln(x, p["ln2_w"], p["ln2_b"])
    m = h2 @ p["fc1_w"].T + p["fc1_b"]
    m = jax.nn.gelu(m, approximate=False)
    m = m @ p["fc2_w"].T + p["fc2_b"]
    return x + p["gamma_2"] * m


def make_params(key):
    ks = jax.random.split(key, 8)
    s = 0.02
    return {
        "ln1_w": jnp.ones((C,), jnp.float32),
        "ln1_b": jnp.zeros((C,), jnp.float32),
        "qkv_w": s * jax.random.normal(ks[0], (3 * ALL_HEAD_DIM, C), jnp.float32),
        "q_bias": s * jax.random.normal(ks[1], (ALL_HEAD_DIM,), jnp.float32),
        "v_bias": s * jax.random.normal(ks[2], (ALL_HEAD_DIM,), jnp.float32),
        "proj_w": s * jax.random.normal(ks[3], (C, ALL_HEAD_DIM), jnp.float32),
        "proj_b": jnp.zeros((C,), jnp.float32),
        "ln2_w": jnp.ones((C,), jnp.float32),
        "ln2_b": jnp.zeros((C,), jnp.float32),
        "fc1_w": s * jax.random.normal(ks[4], (MLP_HIDDEN, C), jnp.float32),
        "fc1_b": s * jax.random.normal(ks[5], (MLP_HIDDEN,), jnp.float32),
        "fc2_w": s * jax.random.normal(ks[6], (C, MLP_HIDDEN), jnp.float32),
        "fc2_b": s * jax.random.normal(ks[7], (C,), jnp.float32),
        "gamma_1": INIT_VALUES * jnp.ones((C,), jnp.float32),
        "gamma_2": INIT_VALUES * jnp.ones((C,), jnp.float32),
    }


if __name__ == "__main__":
    key = jax.random.PRNGKey(0)
    kx, kp = jax.random.split(key)
    x = jax.random.normal(kx, (B, N, C), jnp.float32)
    params = make_params(kp)

    w32, w128 = prepare_params(params)          # one-time weight prep / packing (hoisted)
    out = block_forward(x, w32, w128)
    out = jax.block_until_ready(out)

    ref = block_reference(x, params)
    assert out.shape == (B, N, C)
    max_err = float(jnp.max(jnp.abs(out - ref)))
    assert jnp.allclose(out, ref, rtol=1e-4, atol=1e-4), max_err
    print("KERNEL_OK")
</pallas_src>

<mosaic_0001>
module attributes {stable_mosaic.version = 11 : i64} {
  func.func @block_kernel(%arg0: memref<16x32xf32, #tpu.memory_space<vmem>>, %arg1: memref<480x32xf32, #tpu.memory_space<vmem>>, %arg2: memref<48x128xf32, #tpu.memory_space<vmem>>, %arg3: memref<16x32xf32, #tpu.memory_space<vmem>>) attributes {dimension_semantics = [], scalar_prefetch = 0 : i64, scratch_operands = 0 : i64, tpu.core_type = #tpu.core_type<tc>} {
    %c0 = arith.constant 0 : index
    %c0_0 = arith.constant 0 : index
    %0 = vector.load %arg0[%c0, %c0_0] : memref<16x32xf32, #tpu.memory_space<vmem>>, vector<16x32xf32>
    %c0_1 = arith.constant 0 : index
    %c0_2 = arith.constant 0 : index
    %1 = vector.load %arg1[%c0_1, %c0_2] : memref<480x32xf32, #tpu.memory_space<vmem>>, vector<32x32xf32>
    %c32 = arith.constant 32 : index
    %c0_3 = arith.constant 0 : index
    %2 = vector.load %arg1[%c32, %c0_3] : memref<480x32xf32, #tpu.memory_space<vmem>>, vector<32x32xf32>
    %c64 = arith.constant 64 : index
    %c0_4 = arith.constant 0 : index
    %3 = vector.load %arg1[%c64, %c0_4] : memref<480x32xf32, #tpu.memory_space<vmem>>, vector<32x32xf32>
    %c96 = arith.constant 96 : index
    %c0_5 = arith.constant 0 : index
    %4 = vector.load %arg1[%c96, %c0_5] : memref<480x32xf32, #tpu.memory_space<vmem>>, vector<128x32xf32>
    %c224 = arith.constant 224 : index
    %c0_6 = arith.constant 0 : index
    %5 = vector.load %arg1[%c224, %c0_6] : memref<480x32xf32, #tpu.memory_space<vmem>>, vector<128x32xf32>
    %c352 = arith.constant 352 : index
    %c0_7 = arith.constant 0 : index
    %6 = vector.load %arg1[%c352, %c0_7] : memref<480x32xf32, #tpu.memory_space<vmem>>, vector<64x32xf32>
    %c416 = arith.constant 416 : index
    %c0_8 = arith.constant 0 : index
    %7 = vector.load %arg1[%c416, %c0_8] : memref<480x32xf32, #tpu.memory_space<vmem>>, vector<64x16xf32>
    %c0_9 = arith.constant 0 : index
    %c0_10 = arith.constant 0 : index
    %8 = vector.load %arg2[%c0_9, %c0_10] : memref<48x128xf32, #tpu.memory_space<vmem>>, vector<32x128xf32>
    %c32_11 = arith.constant 32 : index
    %c0_12 = arith.constant 0 : index
    %9 = vector.load %arg2[%c32_11, %c0_12] : memref<48x128xf32, #tpu.memory_space<vmem>>, vector<1x32xf32>
    %c33 = arith.constant 33 : index
    %c0_13 = arith.constant 0 : index
    %10 = vector.load %arg2[%c33, %c0_13] : memref<48x128xf32, #tpu.memory_space<vmem>>, vector<1x32xf32>
    %c34 = arith.constant 34 : index
    %c0_14 = arith.constant 0 : index
    %11 = vector.load %arg2[%c34, %c0_14] : memref<48x128xf32, #tpu.memory_space<vmem>>, vector<1x32xf32>
    %c35 = arith.constant 35 : index
    %c0_15 = arith.constant 0 : index
    %12 = vector.load %arg2[%c35, %c0_15] : memref<48x128xf32, #tpu.memory_space<vmem>>, vector<1x32xf32>
    %c36 = arith.constant 36 : index
    %c0_16 = arith.constant 0 : index
    %13 = vector.load %arg2[%c36, %c0_16] : memref<48x128xf32, #tpu.memory_space<vmem>>, vector<1x32xf32>
    %c37 = arith.constant 37 : index
    %c0_17 = arith.constant 0 : index
    %14 = vector.load %arg2[%c37, %c0_17] : memref<48x128xf32, #tpu.memory_space<vmem>>, vector<1x32xf32>
    %c38 = arith.constant 38 : index
    %c0_18 = arith.constant 0 : index
    %15 = vector.load %arg2[%c38, %c0_18] : memref<48x128xf32, #tpu.memory_space<vmem>>, vector<1x32xf32>
    %c39 = arith.constant 39 : index
    %c0_19 = arith.constant 0 : index
    %16 = vector.load %arg2[%c39, %c0_19] : memref<48x128xf32, #tpu.memory_space<vmem>>, vector<1x128xf32>
    %c40 = arith.constant 40 : index
    %c0_20 = arith.constant 0 : index
    %17 = vector.load %arg2[%c40, %c0_20] : memref<48x128xf32, #tpu.memory_space<vmem>>, vector<1x32xf32>
    %cst = arith.constant dense<0.000000e+00> : vector<16xf32>
    %18 = vector.multi_reduction <add>, %0, %cst [1] : vector<16x32xf32> to vector<16xf32>
    %19 = vector.shape_cast %18 : vector<16xf32> to vector<16x1xf32>
    %cst_21 = arith.constant 3.200000e+01 : f32
    %20 = vector.broadcast %cst_21 : f32 to vector<16x1xf32>
    %21 = arith.divf %19, %20 : vector<16x1xf32>
    %22 = vector.broadcast %21 : vector<16x1xf32> to vector<16x32xf32>
    %23 = arith.subf %0, %22 : vector<16x32xf32>
    %24 = arith.mulf %23, %23 : vector<16x32xf32>
    %cst_22 = arith.constant dense<0.000000e+00> : vector<16xf32>
    %25 = vector.multi_reduction <add>, %24, %cst_22 [1] : vector<16x32xf32> to vector<16xf32>
    %26 = vector.shape_cast %25 : vector<16xf32> to vector<16x1xf32>
    %cst_23 = arith.constant 3.200000e+01 : f32
    %27 = vector.broadcast %cst_23 : f32 to vector<16x1xf32>
    %28 = arith.divf %26, %27 : vector<16x1xf32>
    %29 = vector.broadcast %21 : vector<16x1xf32> to vector<16x32xf32>
    %30 = arith.subf %0, %29 : vector<16x32xf32>
    %cst_24 = arith.constant 9.99999974E-6 : f32
    %31 = vector.broadcast %cst_24 : f32 to vector<16x1xf32>
    %32 = arith.addf %28, %31 : vector<16x1xf32>
    %33 = math.rsqrt %32 : vector<16x1xf32>
    %34 = vector.broadcast %33 : vector<16x1xf32> to vector<16x32xf32>
    %35 = arith.mulf %30, %34 : vector<16x32xf32>
    %36 = vector.broadcast %9 : vector<1x32xf32> to vector<16x32xf32>
    %37 = arith.mulf %35, %36 : vector<16x32xf32>
    %38 = vector.broadcast %10 : vector<1x32xf32> to vector<16x32xf32>
    %39 = arith.addf %37, %38 : vector<16x32xf32>
    %cst_25 = arith.constant dense<0.000000e+00> : vector<16x32xf32>
    %40 = tpu.matmul %39, %1, %cst_25 {dimension_numbers = #tpu.dot_dimension_numbers<[1], [0], [0], [1], [0, 0, 1, 1], [], []>} : vector<16x32xf32>, vector<32x32xf32>, vector<16x32xf32> -> vector<16x32xf32>
    %41 = vector.broadcast %11 : vector<1x32xf32> to vector<16x32xf32>
    %42 = arith.addf %40, %41 : vector<16x32xf32>
    %cst_26 = arith.constant dense<0.000000e+00> : vector<16x32xf32>
    %43 = tpu.matmul %39, %2, %cst_26 {dimension_numbers = #tpu.dot_dimension_numbers<[1], [0], [0], [1], [0, 0, 1, 1], [], []>} : vector<16x32xf32>, vector<32x32xf32>, vector<16x32xf32> -> vector<16x32xf32>
    %cst_27 = arith.constant dense<0.000000e+00> : vector<16x32xf32>
    %44 = tpu.matmul %39, %3, %cst_27 {dimension_numbers = #tpu.dot_dimension_numbers<[1], [0], [0], [1], [0, 0, 1, 1], [], []>} : vector<16x32xf32>, vector<32x32xf32>, vector<16x32xf32> -> vector<16x32xf32>
    %45 = vector.broadcast %12 : vector<1x32xf32> to vector<16x32xf32>
    %46 = arith.addf %44, %45 : vector<16x32xf32>
    %47 = tpu.concatenate %42, %42, %42, %42 in 0 : vector<16x32xf32>, vector<16x32xf32>, vector<16x32xf32>, vector<16x32xf32> -> vector<64x32xf32>
    %48 = arith.mulf %47, %6 : vector<64x32xf32>
    %cst_28 = arith.constant dense<0.000000e+00> : vector<64x16xf32>
    %49 = tpu.matmul %48, %43, %cst_28 {dimension_numbers = #tpu.dot_dimension_numbers<[1], [1], [0], [0], [0, 0, 1, 0], [], []>} : vector<64x32xf32>, vector<16x32xf32>, vector<64x16xf32> -> vector<64x16xf32>
    %50 = arith.addf %49, %7 : vector<64x16xf32>
    %cst_29 = arith.constant dense<0xFF800000> : vector<64xf32>
    %51 = vector.multi_reduction <maximumf>, %50, %cst_29 [1] : vector<64x16xf32> to vector<64xf32>
    %52 = vector.shape_cast %51 : vector<64xf32> to vector<64x1xf32>
    %53 = vector.broadcast %52 : vector<64x1xf32> to vector<64x16xf32>
    %54 = arith.subf %50, %53 : vector<64x16xf32>
    %55 = math.exp %54 : vector<64x16xf32>
    %cst_30 = arith.constant dense<0.000000e+00> : vector<64xf32>
    %56 = vector.multi_reduction <add>, %55, %cst_30 [1] : vector<64x16xf32> to vector<64xf32>
    %57 = vector.shape_cast %56 : vector<64xf32> to vector<64x1xf32>
    %58 = vector.broadcast %57 : vector<64x1xf32> to vector<64x16xf32>
    %59 = arith.divf %55, %58 : vector<64x16xf32>
    %cst_31 = arith.constant dense<0.000000e+00> : vector<64x32xf32>
    %60 = tpu.matmul %59, %46, %cst_31 {dimension_numbers = #tpu.dot_dimension_numbers<[1], [0], [0], [1], [0, 0, 1, 1], [], []>} : vector<64x16xf32>, vector<16x32xf32>, vector<64x32xf32> -> vector<64x32xf32>
    %61 = vector.extract_strided_slice %60 {offsets = [0, 0], sizes = [16, 32], strides = [1, 1]} : vector<64x32xf32> to vector<16x32xf32>
    %62 = vector.extract_strided_slice %60 {offsets = [16, 0], sizes = [16, 32], strides = [1, 1]} : vector<64x32xf32> to vector<16x32xf32>
    %63 = vector.extract_strided_slice %60 {offsets = [32, 0], sizes = [16, 32], strides = [1, 1]} : vector<64x32xf32> to vector<16x32xf32>
    %64 = vector.extract_strided_slice %60 {offsets = [48, 0], sizes = [16, 32], strides = [1, 1]} : vector<64x32xf32> to vector<16x32xf32>
    %65 = tpu.concatenate %61, %62, %63, %64 in 1 : vector<16x32xf32>, vector<16x32xf32>, vector<16x32xf32>, vector<16x32xf32> -> vector<16x128xf32>
    %cst_32 = arith.constant dense<0.000000e+00> : vector<16x32xf32>
    %66 = tpu.matmul %65, %4, %cst_32 {dimension_numbers = #tpu.dot_dimension_numbers<[1], [0], [0], [1], [0, 0, 1, 1], [], []>} : vector<16x128xf32>, vector<128x32xf32>, vector<16x32xf32> -> vector<16x32xf32>
    %67 = vector.broadcast %13 : vector<1x32xf32> to vector<16x32xf32>
    %68 = arith.addf %66, %67 : vector<16x32xf32>
    %69 = arith.addf %0, %68 : vector<16x32xf32>
    %cst_33 = arith.constant dense<0.000000e+00> : vector<16xf32>
    %70 = vector.multi_reduction <add>, %69, %cst_33 [1] : vector<16x32xf32> to vector<16xf32>
    %71 = vector.shape_cast %70 : vector<16xf32> to vector<16x1xf32>
    %cst_34 = arith.constant 3.200000e+01 : f32
    %72 = vector.broadcast %cst_34 : f32 to vector<16x1xf32>
    %73 = arith.divf %71, %72 : vector<16x1xf32>
    %74 = vector.broadcast %73 : vector<16x1xf32> to vector<16x32xf32>
    %75 = arith.subf %69, %74 : vector<16x32xf32>
    %76 = arith.mulf %75, %75 : vector<16x32xf32>
    %cst_35 = arith.constant dense<0.000000e+00> : vector<16xf32>
    %77 = vector.multi_reduction <add>, %76, %cst_35 [1] : vector<16x32xf32> to vector<16xf32>
    %78 = vector.shape_cast %77 : vector<16xf32> to vector<16x1xf32>
    %cst_36 = arith.constant 3.200000e+01 : f32
    %79 = vector.broadcast %cst_36 : f32 to vector<16x1xf32>
    %80 = arith.divf %78, %79 : vector<16x1xf32>
    %81 = vector.broadcast %73 : vector<16x1xf32> to vector<16x32xf32>
    %82 = arith.subf %69, %81 : vector<16x32xf32>
    %cst_37 = arith.constant 9.99999974E-6 : f32
    %83 = vector.broadcast %cst_37 : f32 to vector<16x1xf32>
    %84 = arith.addf %80, %83 : vector<16x1xf32>
    %85 = math.rsqrt %84 : vector<16x1xf32>
    %86 = vector.broadcast %85 : vector<16x1xf32> to vector<16x32xf32>
    %87 = arith.mulf %82, %86 : vector<16x32xf32>
    %88 = vector.broadcast %14 : vector<1x32xf32> to vector<16x32xf32>
    %89 = arith.mulf %87, %88 : vector<16x32xf32>
    %90 = vector.broadcast %15 : vector<1x32xf32> to vector<16x32xf32>
    %91 = arith.addf %89, %90 : vector<16x32xf32>
    %cst_38 = arith.constant dense<0.000000e+00> : vector<16x128xf32>
    %92 = tpu.matmul %91, %8, %cst_38 {dimension_numbers = #tpu.dot_dimension_numbers<[1], [0], [0], [1], [0, 0, 1, 1], [], []>} : vector<16x32xf32>, vector<32x128xf32>, vector<16x128xf32> -> vector<16x128xf32>
    %93 = vector.broadcast %16 : vector<1x128xf32> to vector<16x128xf32>
    %94 = arith.addf %92, %93 : vector<16x128xf32>
    %cst_39 = arith.constant 5.000000e-01 : f32
    %95 = vector.broadcast %cst_39 : f32 to vector<16x128xf32>
    %96 = arith.mulf %95, %94 : vector<16x128xf32>
    %cst_40 = arith.constant 0.707106769 : f32
    %97 = vector.broadcast %cst_40 : f32 to vector<16x128xf32>
    %98 = arith.mulf %94, %97 : vector<16x128xf32>
    %99 = math.absf %98 : vector<16x128xf32>
    %cst_41 = arith.constant 0.327591091 : f32
    %100 = vector.broadcast %cst_41 : f32 to vector<16x128xf32>
    %101 = arith.mulf %100, %99 : vector<16x128xf32>
    %cst_42 = arith.constant 1.000000e+00 : f32
    %102 = vector.broadcast %cst_42 : f32 to vector<16x128xf32>
    %103 = arith.addf %102, %101 : vector<16x128xf32>
    %cst_43 = arith.constant 1.000000e+00 : f32
    %104 = vector.broadcast %cst_43 : f32 to vector<16x128xf32>
    %105 = arith.divf %104, %103 : vector<16x128xf32>
    %cst_44 = arith.constant 1.06140542 : f32
    %106 = vector.broadcast %cst_44 : f32 to vector<16x128xf32>
    %107 = arith.mulf %106, %105 : vector<16x128xf32>
    %cst_45 = arith.constant -1.45315206 : f32
    %108 = vector.broadcast %cst_45 : f32 to vector<16x128xf32>
    %109 = arith.addf %107, %108 : vector<16x128xf32>
    %110 = arith.mulf %109, %105 : vector<16x128xf32>
    %cst_46 = arith.constant 1.42141378 : f32
    %111 = vector.broadcast %cst_46 : f32 to vector<16x128xf32>
    %112 = arith.addf %110, %111 : vector<16x128xf32>
    %113 = arith.mulf %112, %105 : vector<16x128xf32>
    %cst_47 = arith.constant -0.284496725 : f32
    %114 = vector.broadcast %cst_47 : f32 to vector<16x128xf32>
    %115 = arith.addf %113, %114 : vector<16x128xf32>
    %116 = arith.mulf %115, %105 : vector<16x128xf32>
    %cst_48 = arith.constant 0.254829586 : f32
    %117 = vector.broadcast %cst_48 : f32 to vector<16x128xf32>
    %118 = arith.addf %116, %117 : vector<16x128xf32>
    %119 = arith.mulf %118, %105 : vector<16x128xf32>
    %cst_49 = arith.constant 0.000000e+00 : f32
    %120 = vector.broadcast %cst_49 : f32 to vector<16x128xf32>
    %121 = arith.subf %120, %99 : vector<16x128xf32>
    %122 = arith.mulf %121, %99 : vector<16x128xf32>
    %123 = math.exp %122 : vector<16x128xf32>
    %124 = arith.mulf %119, %123 : vector<16x128xf32>
    %cst_50 = arith.constant 1.000000e+00 : f32
    %125 = vector.broadcast %cst_50 : f32 to vector<16x128xf32>
    %126 = arith.subf %125, %124 : vector<16x128xf32>
    %cst_51 = arith.constant 0.000000e+00 : f32
    %127 = vector.broadcast %cst_51 : f32 to vector<16x128xf32>
    %128 = arith.cmpf oge, %98, %127 : vector<16x128xf32>
    %cst_52 = arith.constant 0.000000e+00 : f32
    %129 = vector.broadcast %cst_52 : f32 to vector<16x128xf32>
    %130 = arith.subf %129, %126 : vector<16x128xf32>
    %131 = arith.select %128, %126, %130 : vector<16x128xi1>, vector<16x128xf32>
    %cst_53 = arith.constant 1.000000e+00 : f32
    %132 = vector.broadcast %cst_53 : f32 to vector<16x128xf32>
    %133 = arith.addf %132, %131 : vector<16x128xf32>
    %134 = arith.mulf %96, %133 : vector<16x128xf32>
    %cst_54 = arith.constant dense<0.000000e+00> : vector<16x32xf32>
    %135 = tpu.matmul %134, %5, %cst_54 {dimension_numbers = #tpu.dot_dimension_numbers<[1], [0], [0], [1], [0, 0, 1, 1], [], []>} : vector<16x128xf32>, vector<128x32xf32>, vector<16x32xf32> -> vector<16x32xf32>
    %136 = vector.broadcast %17 : vector<1x32xf32> to vector<16x32xf32>
    %137 = arith.addf %135, %136 : vector<16x32xf32>
    %138 = arith.addf %69, %137 : vector<16x32xf32>
    %c0_55 = arith.constant 0 : index
    %c0_56 = arith.constant 0 : index
    %139 = vector.load %arg3[%c0_55, %c0_56] : memref<16x32xf32, #tpu.memory_space<vmem>>, vector<16x32xf32>
    tpu.vector_store %arg3[%c0_55, %c0_56], %138 {strides = array<i32>} : memref<16x32xf32, #tpu.memory_space<vmem>>, vector<16x32xf32>,
    return
  }
}

</mosaic_0001>

<llo_original>
// kernel: block_forward.1
$region0: #{block_forward.1}
  #allocation0 [shape = 'u32[]', space=smem, size = 0x4, offset = 0x4, fixed_abs, tag = 'smem constant byte address 0x4 - core index']
  #allocation1 [shape = 'u32[144,128]{1,0:T(1,128)}', space=vmem, size = 0x12000, scoped, tag = 'internal scratch']
  %s0 = inlined_call_operand.vmem [shape: f32[16,32], index: 0, kind: input, shape index: {}]
  %s1 = inlined_call_operand.vmem [shape: f32[480,32], index: 1, kind: input, shape index: {}]
  %s2 = inlined_call_operand.vmem [shape: f32[48,128], index: 2, kind: input, shape index: {}]
  %s3 = inlined_call_operand.hbm [shape: f32[16,32], index: 3, kind: output, shape index: {}]
  %s4 = sld [smem:[#allocation0]]
  $region22: #{block_forward.1} parent=0
    _
  %s6 = ssub.s32 1, %s4
  %s7 = scalar_select 0, %s6, %s4
  $region1: #{block_forward.1} parent=0
    #allocation2 [shape = 'u8[8192]{0}', space=vmem, size = 0x2000, scoped, tag = 'output window, operand 0, single buffered']
    #allocation3 [shape = 's32[1]{0}', space=sflag, size = 0x4, scoped, tag = 'scoped memory for block_forward.1']
    %8 = vsyncpa [#allocation3], 0
    // Predicated region
    $region2: #{block_forward.1} parent=1 // pred_check
      _
    $region3: #{block_forward.1} parent=1 // pred_check_branch
      %10 = sbr.rel (0) target = $region5
    $region4: #{block_forward.1} parent=1 // pred_region
      _
    $region5: #{block_forward.1} parent=1 // pred_fallthru
      _
    // Predicated region
    $region6: #{block_forward.1} parent=1 // pred_check
      _
    $region7: #{block_forward.1} parent=1 // pred_check_branch
      %12 = sbr.rel (0) target = $region9
    $region8: #{block_forward.1} parent=1 // pred_region
      _
    $region9: #{block_forward.1} parent=1 // pred_fallthru
      _
    // Predicated region
    $region10: #{block_forward.1} parent=1 // pred_check
      _
    $region11: #{block_forward.1} parent=1 // pred_check_branch
      %14 = sbr.rel (0) target = $region13
    $region12: #{block_forward.1} parent=1 // pred_region
      _
    $region13: #{block_forward.1} parent=1 // pred_fallthru
      _
    %v15 = vld [vmem:[%s0] sm:$0xff]
    %v16 = vld [vmem:[%s0 + $0x8] sm:$0xff]
    %v17 = vld [vmem:[%s1] sm:$0xff]
    %v18 = vld [vmem:[%s1 + $0x8] sm:$0xff]
    %v19 = vld [vmem:[%s1 + $0x10] sm:$0xff]
    %v20 = vld [vmem:[%s1 + $0x18] sm:$0xff]
    %v21 = vld [vmem:[%s1 + $0x20] sm:$0xff]
    %v22 = vld [vmem:[%s1 + $0x28] sm:$0xff]
    %v23 = vld [vmem:[%s1 + $0x30] sm:$0xff]
    %v24 = vld [vmem:[%s1 + $0x38] sm:$0xff]
    %v25 = vld [vmem:[%s1 + $0x40] sm:$0xff]
    %v26 = vld [vmem:[%s1 + $0x48] sm:$0xff]
    %v27 = vld [vmem:[%s1 + $0x50] sm:$0xff]
    %v28 = vld [vmem:[%s1 + $0x58] sm:$0xff]
    %v29 = vld [vmem:[%s1 + $0x60] sm:$0xff]
    %v30 = vld [vmem:[%s1 + $0x68] sm:$0xff]
    %v31 = vld [vmem:[%s1 + $0x70] sm:$0xff]
    %v32 = vld [vmem:[%s1 + $0x78] sm:$0xff]
    %v33 = vld [vmem:[%s1 + $0x80] sm:$0xff]
    %v34 = vld [vmem:[%s1 + $0x88] sm:$0xff]
    %v35 = vld [vmem:[%s1 + $0x90] sm:$0xff]
    %v36 = vld [vmem:[%s1 + $0x98] sm:$0xff]
    %v37 = vld [vmem:[%s1 + $0xa0] sm:$0xff]
    %v38 = vld [vmem:[%s1 + $0xa8] sm:$0xff]
    %v39 = vld [vmem:[%s1 + $0xb0] sm:$0xff]
    %v40 = vld [vmem:[%s1 + $0xb8] sm:$0xff]
    %v41 = vld [vmem:[%s1 + $0xc0] sm:$0xff]
    %v42 = vld [vmem:[%s1 + $0xc8] sm:$0xff]
    %v43 = vld [vmem:[%s1 + $0xd0] sm:$0xff]
    %v44 = vld [vmem:[%s1 + $0xd8] sm:$0xff]
    %v45 = vld [vmem:[%s1 + $0xe0] sm:$0xff]
    %v46 = vld [vmem:[%s1 + $0xe8] sm:$0xff]
    %v47 = vld [vmem:[%s1 + $0xf0] sm:$0xff]
    %v48 = vld [vmem:[%s1 + $0xf8] sm:$0xff]
    %v49 = vld [vmem:[%s1 + $0x100] sm:$0xff]
    %v50 = vld [vmem:[%s1 + $0x108] sm:$0xff]
    %v51 = vld [vmem:[%s1 + $0x110] sm:$0xff]
    %v52 = vld [vmem:[%s1 + $0x118] sm:$0xff]
    %v53 = vld [vmem:[%s1 + $0x120] sm:$0xff]
    %v54 = vld [vmem:[%s1 + $0x128] sm:$0xff]
    %v55 = vld [vmem:[%s1 + $0x130] sm:$0xff]
    %v56 = vld [vmem:[%s1 + $0x138] sm:$0xff]
    %v57 = vld [vmem:[%s1 + $0x140] sm:$0xff]
    %v58 = vld [vmem:[%s1 + $0x148] sm:$0xff]
    %v59 = vld [vmem:[%s1 + $0x150] sm:$0xff]
    %v60 = vld [vmem:[%s1 + $0x158] sm:$0xff]
    %v61 = vld [vmem:[%s1 + $0x160] sm:$0xff]
    %v62 = vld [vmem:[%s1 + $0x168] sm:$0xff]
    %v63 = vld [vmem:[%s1 + $0x170] sm:$0xff]
    %v64 = vld [vmem:[%s1 + $0x178] sm:$0xff]
    %v65 = vld [vmem:[%s1 + $0x180] sm:$0xff]
    %v66 = vld [vmem:[%s1 + $0x188] sm:$0xff]
    %v67 = vld [vmem:[%s1 + $0x190] sm:$0xff]
    %v68 = vld [vmem:[%s1 + $0x198] sm:$0xff]
    %v69 = vld [vmem:[%s1 + $0x1a0] sm:$0xff]
    %v70 = vld [vmem:[%s1 + $0x1a8] sm:$0xff]
    %v71 = vld [vmem:[%s1 + $0x1b0] sm:$0xff]
    %v72 = vld [vmem:[%s1 + $0x1b8] sm:$0xff]
    %v73 = vld [vmem:[%s1 + $0x1c0] sm:$0xff]
    %v74 = vld [vmem:[%s1 + $0x1c8] sm:$0xff]
    %v75 = vld [vmem:[%s1 + $0x1d0] sm:$0xff]
    %v76 = vld [vmem:[%s1 + $0x1d8] sm:$0xff]
    %v77 = vld [vmem:[%s2] sm:$0xff]
    %v78 = vld [vmem:[%s2 + $0x8] sm:$0xff]
    %v79 = vld [vmem:[%s2 + $0x10] sm:$0xff]
    %v80 = vld [vmem:[%s2 + $0x18] sm:$0xff]
    %v81 = vld [vmem:[%s2 + $0x20] sm:$0x1]
    %v82 = vld [vmem:[%s2 + $0x21] sm:$0x1]
    %v83 = vld [vmem:[%s2 + $0x22] sm:$0x1]
    %v84 = vld [vmem:[%s2 + $0x23] sm:$0x1]
    %v85 = vld [vmem:[%s2 + $0x24] sm:$0x1]
    %v86 = vld [vmem:[%s2 + $0x25] sm:$0x1]
    %v87 = vld [vmem:[%s2 + $0x26] sm:$0x1]
    %v88 = vld [vmem:[%s2 + $0x27] sm:$0x1]
    %v89 = vld [vmem:[%s2 + $0x28] sm:$0x1]
    %vm90 = vcmask 261120
    %v91 = vsel %vm90, %v15, 0.0
    %92 = vadd.xlane.f32.xlu0 %v91
    %v93 = vpop.xlane.xlu0 %92
    %v94 = vsel %vm90, %v16, 0.0
    %95 = vadd.xlane.f32.xlu0 %v94
    %v96 = vpop.xlane.xlu0 %95
    %v97 = vrcp.pop 32.0
    %v98 = vmul.f32 %v93, %v97
    %v99 = vmul.f32 %v96, %v97
    %v100 = vsub.f32 %v15, %v98
    %v101 = vsub.f32 %v16, %v99
    %v102 = vmul.f32 %v100, %v100
    %v103 = vmul.f32 %v101, %v101
    %v104 = vsel %vm90, %v102, 0.0
    %105 = vadd.xlane.f32.xlu0 %v104
    %v106 = vpop.xlane.xlu0 %105
    %v107 = vsel %vm90, %v103, 0.0
    %108 = vadd.xlane.f32.xlu0 %v107
    %v109 = vpop.xlane.xlu0 %108
    %v110 = vmul.f32 %v106, %v97
    %v111 = vmul.f32 %v109, %v97
    %v112 = vadd.f32 %v110, 1e-05
    %v113 = vadd.f32 %v111, 1e-05
    %v114 = vrsqrt.pop %v112
    %v115 = vrsqrt.pop %v113
    %v116 = vmul.f32 %v100, %v114
    %v117 = vmul.f32 %v101, %v115
    %v118 = vlaneseq
    %v119 = vshrl.u32 %v118, 7
    %v120 = vsub.s32 0, %v119
    %v121 = vrot.slane %v81, %v120
    %v122 = vmul.f32 %v116, %v121
    %v123 = vmul.f32 %v117, %v121
    %v124 = vlaneseq
    %v125 = vshrl.u32 %v124, 7
    %v126 = vsub.s32 0, %v125
    %v127 = vrot.slane %v82, %v126
    %v128 = vadd.f32 %v122, %v127
    %v129 = vadd.f32 %v123, %v127
    %v130 = vlaneseq
    %v131 = vshrl.u32 %v130, 7
    %v132 = vsub.s32 0, %v131
    %v133 = vrot.slane %v83, %v132
    %v135 = vsel %vm90, %v128, 0
    %v138 = vsel %vm90, %v129, 0
    %140 = vmatprep.subr.mxu0 0.0
    %141 = vmatpush1.msra.mxu0 %v17
    %142 = vmatprep.subr.mxu0 0.0
    %143 = vmatpush1.msra.mxu0 %v18
    %144 = vmatprep.subr.mxu0 0.0
    %145 = vmatpush1.msra.mxu0 %v19
    %146 = vmatprep.subr.mxu0 0.0
    %147 = vmatpush1.msra.mxu0 %v20
    %148 = vmatprep.subr.mxu0 0.0
    %149 = vmatpush1.msra.mxu0 0.0
    %150 = vmatprep.subr.mxu0 0.0
    %151 = vmatpush1.msra.mxu0 0.0
    %152 = vmatprep.subr.mxu0 0.0
    %153 = vmatpush1.msra.mxu0 0.0
    %154 = vmatprep.subr.mxu0 0.0
    %155 = vmatpush1.msra.mxu0 0.0
    %156 = vmatprep.subr.mxu0 0.0
    %157 = vmatpush1.msra.mxu0 0.0
    %158 = vmatprep.subr.mxu0 0.0
    %159 = vmatpush1.msra.mxu0 0.0
    %160 = vmatprep.subr.mxu0 0.0
    %161 = vmatpush1.msra.mxu0 0.0
    %162 = vmatprep.subr.mxu0 0.0
    %163 = vmatpush1.msra.mxu0 0.0
    %164 = vmatprep.subr.mxu0 0.0
    %165 = vmatpush1.msra.mxu0 0.0
    %166 = vmatprep.subr.mxu0 0.0
    %167 = vmatpush1.msra.mxu0 0.0
    %168 = vmatprep.subr.mxu0 0.0
    %169 = vmatpush1.msra.mxu0 0.0
    %170 = vmatprep.subr.mxu0 0.0
    %171 = vmatpush1.msra.mxu0 0.0
    %172 = vmatprep.subr.mxu0 0.0
    %173 = vmatpush1.msra.mxu0 0.0
    %174 = vmatprep.subr.mxu0 0.0
    %175 = vmatpush1.msra.mxu0 0.0
    %176 = vmatprep.subr.mxu0 0.0
    %177 = vmatpush1.msra.mxu0 0.0
    %178 = vmatprep.subr.mxu0 0.0
    %179 = vmatpush1.msra.mxu0 0.0
    %180 = vmatprep.subr.mxu0 0.0
    %181 = vmatpush1.msra.mxu0 0.0
    %182 = vmatprep.subr.mxu0 0.0
    %183 = vmatpush1.msra.mxu0 0.0
    %184 = vmatprep.subr.mxu0 0.0
    %185 = vmatpush1.msra.mxu0 0.0
    %186 = vmatprep.subr.mxu0 0.0
    %187 = vmatpush1.msra.mxu0 0.0
    %188 = vmatprep.subr.mxu0 0.0
    %189 = vmatpush1.msra.mxu0 0.0
    %190 = vmatprep.subr.mxu0 0.0
    %191 = vmatpush1.msra.mxu0 0.0
    %192 = vmatprep.subr.mxu0 0.0
    %193 = vmatpush1.msra.mxu0 0.0
    %194 = vmatprep.subr.mxu0 0.0
    %195 = vmatpush1.msra.mxu0 0.0
    %196 = vmatprep.subr.mxu0 0.0
    %197 = vmatpush1.msra.mxu0 0.0
    %198 = vmatprep.subr.mxu0 0.0
    %199 = vmatpush1.msra.mxu0 0.0
    %200 = vmatprep.subr.mxu0 0.0
    %201 = vmatpush1.msra.mxu0 0.0
    %202 = vmatprep.subr.mxu0 0.0
    %203 = vmatpush1.msra.mxu0 0.0
    %204 = vmatprep.mubr.f32.mxu0 0.0
    %205 = vmatmul.mubr.f32.gmra.mrb[0].mxu0 %v135
    %v206 = vpop.f32.mrb[0].mxu0
    %v207 = vadd.f32 %v133, %v206
    %v208 = vpop.f32.mrb[0].mxu0
    %209 = vmatprep.mubr.f32.mxu0 0.0
    %210 = vmatmul.mubr.f32.gmra.mrb[0].mxu0 %v138
    %v211 = vpop.f32.mrb[0].mxu0
    %v212 = vadd.f32 %v133, %v211
    %v213 = vpop.f32.mrb[0].mxu0
    %214 = vdwg.mxu0
    %215 = vmatprep.subr.mxu0 0.0
    %216 = vmatpush1.msra.mxu0 %v21
    %217 = vmatprep.subr.mxu0 0.0
    %218 = vmatpush1.msra.mxu0 %v22
    %219 = vmatprep.subr.mxu0 0.0
    %220 = vmatpush1.msra.mxu0 %v23
    %221 = vmatprep.subr.mxu0 0.0
    %222 = vmatpush1.msra.mxu0 %v24
    %223 = vmatprep.subr.mxu0 0.0
    %224 = vmatpush1.msra.mxu0 0.0
    %225 = vmatprep.subr.mxu0 0.0
    %226 = vmatpush1.msra.mxu0 0.0
    %227 = vmatprep.subr.mxu0 0.0
    %228 = vmatpush1.msra.mxu0 0.0
    %229 = vmatprep.subr.mxu0 0.0
    %230 = vmatpush1.msra.mxu0 0.0
    %231 = vmatprep.subr.mxu0 0.0
    %232 = vmatpush1.msra.mxu0 0.0
    %233 = vmatprep.subr.mxu0 0.0
    %234 = vmatpush1.msra.mxu0 0.0
    %235 = vmatprep.subr.mxu0 0.0
    %236 = vmatpush1.msra.mxu0 0.0
    %237 = vmatprep.subr.mxu0 0.0
    %238 = vmatpush1.msra.mxu0 0.0
    %239 = vmatprep.subr.mxu0 0.0
    %240 = vmatpush1.msra.mxu0 0.0
    %241 = vmatprep.subr.mxu0 0.0
    %242 = vmatpush1.msra.mxu0 0.0
    %243 = vmatprep.subr.mxu0 0.0
    %244 = vmatpush1.msra.mxu0 0.0
    %245 = vmatprep.subr.mxu0 0.0
    %246 = vmatpush1.msra.mxu0 0.0
    %247 = vmatprep.subr.mxu0 0.0
    %248 = vmatpush1.msra.mxu0 0.0
    %249 = vmatprep.subr.mxu0 0.0
    %250 = vmatpush1.msra.mxu0 0.0
    %251 = vmatprep.subr.mxu0 0.0
    %252 = vmatpush1.msra.mxu0 0.0
    %253 = vmatprep.subr.mxu0 0.0
    %254 = vmatpush1.msra.mxu0 0.0
    %255 = vmatprep.subr.mxu0 0.0
    %256 = vmatpush1.msra.mxu0 0.0
    %257 = vmatprep.subr.mxu0 0.0
    %258 = vmatpush1.msra.mxu0 0.0
    %259 = vmatprep.subr.mxu0 0.0
    %260 = vmatpush1.msra.mxu0 0.0
    %261 = vmatprep.subr.mxu0 0.0
    %262 = vmatpush1.msra.mxu0 0.0
    %263 = vmatprep.subr.mxu0 0.0
    %264 = vmatpush1.msra.mxu0 0.0
    %265 = vmatprep.subr.mxu0 0.0
    %266 = vmatpush1.msra.mxu0 0.0
    %267 = vmatprep.subr.mxu0 0.0
    %268 = vmatpush1.msra.mxu0 0.0
    %269 = vmatprep.subr.mxu0 0.0
    %270 = vmatpush1.msra.mxu0 0.0
    %271 = vmatprep.subr.mxu0 0.0
    %272 = vmatpush1.msra.mxu0 0.0
    %273 = vmatprep.subr.mxu0 0.0
    %274 = vmatpush1.msra.mxu0 0.0
    %275 = vmatprep.subr.mxu0 0.0
    %276 = vmatpush1.msra.mxu0 0.0
    %277 = vmatprep.subr.mxu0 0.0
    %278 = vmatpush1.msra.mxu0 0.0
    %279 = vmatprep.mubr.f32.mxu0 0.0
    %280 = vmatmul.mubr.f32.gmra.mrb[0].mxu0 %v135
    %v281 = vpop.f32.mrb[0].mxu0
    %v282 = vadd.f32 0.0, %v281
    %v283 = vpop.f32.mrb[0].mxu0
    %284 = vmatprep.mubr.f32.mxu0 0.0
    %285 = vmatmul.mubr.f32.gmra.mrb[0].mxu0 %v138
    %v286 = vpop.f32.mrb[0].mxu0
    %v287 = vadd.f32 0.0, %v286
    %v288 = vpop.f32.mrb[0].mxu0
    %289 = vdwg.mxu0
    %v290 = vlaneseq
    %v291 = vshrl.u32 %v290, 7
    %v292 = vsub.s32 0, %v291
    %v293 = vrot.slane %v84, %v292
    %294 = vmatprep.subr.mxu0 0.0
    %295 = vmatpush1.msra.mxu0 %v25
    %296 = vmatprep.subr.mxu0 0.0
    %297 = vmatpush1.msra.mxu0 %v26
    %298 = vmatprep.subr.mxu0 0.0
    %299 = vmatpush1.msra.mxu0 %v27
    %300 = vmatprep.subr.mxu0 0.0
    %301 = vmatpush1.msra.mxu0 %v28
    %302 = vmatprep.subr.mxu0 0.0
    %303 = vmatpush1.msra.mxu0 0.0
    %304 = vmatprep.subr.mxu0 0.0
    %305 = vmatpush1.msra.mxu0 0.0
    %306 = vmatprep.subr.mxu0 0.0
    %307 = vmatpush1.msra.mxu0 0.0
    %308 = vmatprep.subr.mxu0 0.0
    %309 = vmatpush1.msra.mxu0 0.0
    %310 = vmatprep.subr.mxu0 0.0
    %311 = vmatpush1.msra.mxu0 0.0
    %312 = vmatprep.subr.mxu0 0.0
    %313 = vmatpush1.msra.mxu0 0.0
    %314 = vmatprep.subr.mxu0 0.0
    %315 = vmatpush1.msra.mxu0 0.0
    %316 = vmatprep.subr.mxu0 0.0
    %317 = vmatpush1.msra.mxu0 0.0
    %318 = vmatprep.subr.mxu0 0.0
    %319 = vmatpush1.msra.mxu0 0.0
    %320 = vmatprep.subr.mxu0 0.0
    %321 = vmatpush1.msra.mxu0 0.0
    %322 = vmatprep.subr.mxu0 0.0
    %323 = vmatpush1.msra.mxu0 0.0
    %324 = vmatprep.subr.mxu0 0.0
    %325 = vmatpush1.msra.mxu0 0.0
    %326 = vmatprep.subr.mxu0 0.0
    %327 = vmatpush1.msra.mxu0 0.0
    %328 = vmatprep.subr.mxu0 0.0
    %329 = vmatpush1.msra.mxu0 0.0
    %330 = vmatprep.subr.mxu0 0.0
    %331 = vmatpush1.msra.mxu0 0.0
    %332 = vmatprep.subr.mxu0 0.0
    %333 = vmatpush1.msra.mxu0 0.0
    %334 = vmatprep.subr.mxu0 0.0
    %335 = vmatpush1.msra.mxu0 0.0
    %336 = vmatprep.subr.mxu0 0.0
    %337 = vmatpush1.msra.mxu0 0.0
    %338 = vmatprep.subr.mxu0 0.0
    %339 = vmatpush1.msra.mxu0 0.0
    %340 = vmatprep.subr.mxu0 0.0
    %341 = vmatpush1.msra.mxu0 0.0
    %342 = vmatprep.subr.mxu0 0.0
    %343 = vmatpush1.msra.mxu0 0.0
    %344 = vmatprep.subr.mxu0 0.0
    %345 = vmatpush1.msra.mxu0 0.0
    %346 = vmatprep.subr.mxu0 0.0
    %347 = vmatpush1.msra.mxu0 0.0
    %348 = vmatprep.subr.mxu0 0.0
    %349 = vmatpush1.msra.mxu0 0.0
    %350 = vmatprep.subr.mxu0 0.0
    %351 = vmatpush1.msra.mxu0 0.0
    %352 = vmatprep.subr.mxu0 0.0
    %353 = vmatpush1.msra.mxu0 0.0
    %354 = vmatprep.subr.mxu0 0.0
    %355 = vmatpush1.msra.mxu0 0.0
    %356 = vmatprep.subr.mxu0 0.0
    %357 = vmatpush1.msra.mxu0 0.0
    %358 = vmatprep.mubr.f32.mxu0 0.0
    %359 = vmatmul.mubr.f32.gmra.mrb[0].mxu0 %v135
    %v360 = vpop.f32.mrb[0].mxu0
    %v361 = vadd.f32 %v293, %v360
    %v362 = vpop.f32.mrb[0].mxu0
    %363 = vmatprep.mubr.f32.mxu0 0.0
    %364 = vmatmul.mubr.f32.gmra.mrb[0].mxu0 %v138
    %v365 = vpop.f32.mrb[0].mxu0
    %v366 = vadd.f32 %v293, %v365
    %v367 = vpop.f32.mrb[0].mxu0
    %368 = vdwg.mxu0
    %v369 = vmul.f32 %v207, %v61
    %v370 = vmul.f32 %v212, %v62
    %v371 = vmul.f32 %v207, %v63
    %v372 = vmul.f32 %v212, %v64
    %v373 = vmul.f32 %v207, %v65
    %v374 = vmul.f32 %v212, %v66
    %v375 = vmul.f32 %v207, %v67
    %v376 = vmul.f32 %v212, %v68
    %v378 = vsel %vm90, %v369, 0
    %v381 = vsel %vm90, %v370, 0
    %v384 = vsel %vm90, %v371, 0
    %v387 = vsel %vm90, %v372, 0
    %v390 = vsel %vm90, %v373, 0
    %v393 = vsel %vm90, %v374, 0
    %v396 = vsel %vm90, %v375, 0
    %v399 = vsel %vm90, %v376, 0
    %v402 = vsel %vm90, %v282, 0
    %v405 = vsel %vm90, %v287, 0
    %407 = vmatprep.subr.mxu0 0.0
    %408 = vmatpush1.xpose.msra.mxu0 %v402
    %409 = vmatprep.subr.mxu0 0.0
    %410 = vmatpush1.xpose.msra.mxu0 %v405
    %411 = vmatprep.subr.mxu0 0.0
    %412 = vmatpush1.xpose.msra.mxu0 0.0
    %413 = vmatprep.subr.mxu0 0.0
    %414 = vmatpush1.xpose.msra.mxu0 0.0
    %415 = vmatprep.subr.mxu0 0.0
    %416 = vmatpush1.xpose.msra.mxu0 0.0
    %417 = vmatprep.subr.mxu0 0.0
    %418 = vmatpush1.xpose.msra.mxu0 0.0
    %419 = vmatprep.subr.mxu0 0.0
    %420 = vmatpush1.xpose.msra.mxu0 0.0
    %421 = vmatprep.subr.mxu0 0.0
    %422 = vmatpush1.xpose.msra.mxu0 0.0
    %423 = vmatprep.subr.mxu0 0.0
    %424 = vmatpush1.xpose.msra.mxu0 0.0
    %425 = vmatprep.subr.mxu0 0.0
    %426 = vmatpush1.xpose.msra.mxu0 0.0
    %427 = vmatprep.subr.mxu0 0.0
    %428 = vmatpush1.xpose.msra.mxu0 0.0
    %429 = vmatprep.subr.mxu0 0.0
    %430 = vmatpush1.xpose.msra.mxu0 0.0
    %431 = vmatprep.subr.mxu0 0.0
    %432 = vmatpush1.xpose.msra.mxu0 0.0
    %433 = vmatprep.subr.mxu0 0.0
    %434 = vmatpush1.xpose.msra.mxu0 0.0
    %435 = vmatprep.subr.mxu0 0.0
    %436 = vmatpush1.xpose.msra.mxu0 0.0
    %437 = vmatprep.subr.mxu0 0.0
    %438 = vmatpush1.xpose.msra.mxu0 0.0
    %439 = vmatprep.subr.mxu0 0.0
    %440 = vmatpush1.xpose.msra.mxu0 0.0
    %441 = vmatprep.subr.mxu0 0.0
    %442 = vmatpush1.xpose.msra.mxu0 0.0
    %443 = vmatprep.subr.mxu0 0.0
    %444 = vmatpush1.xpose.msra.mxu0 0.0
    %445 = vmatprep.subr.mxu0 0.0
    %446 = vmatpush1.xpose.msra.mxu0 0.0
    %447 = vmatprep.subr.mxu0 0.0
    %448 = vmatpush1.xpose.msra.mxu0 0.0
    %449 = vmatprep.subr.mxu0 0.0
    %450 = vmatpush1.xpose.msra.mxu0 0.0
    %451 = vmatprep.subr.mxu0 0.0
    %452 = vmatpush1.xpose.msra.mxu0 0.0
    %453 = vmatprep.subr.mxu0 0.0
    %454 = vmatpush1.xpose.msra.mxu0 0.0
    %455 = vmatprep.subr.mxu0 0.0
    %456 = vmatpush1.xpose.msra.mxu0 0.0
    %457 = vmatprep.subr.mxu0 0.0
    %458 = vmatpush1.xpose.msra.mxu0 0.0
    %459 = vmatprep.subr.mxu0 0.0
    %460 = vmatpush1.xpose.msra.mxu0 0.0
    %461 = vmatprep.subr.mxu0 0.0
    %462 = vmatpush1.xpose.msra.mxu0 0.0
    %463 = vmatprep.subr.mxu0 0.0
    %464 = vmatpush1.xpose.msra.mxu0 0.0
    %465 = vmatprep.subr.mxu0 0.0
    %466 = vmatpush1.xpose.msra.mxu0 0.0
    %467 = vmatprep.subr.mxu0 0.0
    %468 = vmatpush1.xpose.msra.mxu0 0.0
    %469 = vmatprep.subr.mxu0 0.0
    %470 = vmatpush1.xpose.msra.mxu0 0.0
    %471 = vmatprep.mubr.f32.mxu0 0.0
    %472 = vmatmul.mubr.f32.gmra.mrb[0].mxu0 %v378
    %v473 = vpop.f32.mrb[0].mxu0
    %v474 = vadd.f32 %v69, %v473
    %v475 = vpop.f32.mrb[0].mxu0
    %476 = vmatprep.mubr.f32.mxu0 0.0
    %477 = vmatmul.mubr.f32.gmra.mrb[0].mxu0 %v381
    %v478 = vpop.f32.mrb[0].mxu0
    %v479 = vadd.f32 %v70, %v478
    %v480 = vpop.f32.mrb[0].mxu0
    %481 = vmatprep.mubr.f32.mxu0 0.0
    %482 = vmatmul.mubr.f32.gmra.mrb[0].mxu0 %v384
    %v483 = vpop.f32.mrb[0].mxu0
    %v484 = vadd.f32 %v71, %v483
    %v485 = vpop.f32.mrb[0].mxu0
    %486 = vmatprep.mubr.f32.mxu0 0.0
    %487 = vmatmul.mubr.f32.gmra.mrb[0].mxu0 %v387
    %v488 = vpop.f32.mrb[0].mxu0
    %v489 = vadd.f32 %v72, %v488
    %v490 = vpop.f32.mrb[0].mxu0
    %491 = vmatprep.mubr.f32.mxu0 0.0
    %492 = vmatmul.mubr.f32.gmra.mrb[0].mxu0 %v390
    %v493 = vpop.f32.mrb[0].mxu0
    %v494 = vadd.f32 %v73, %v493
    %v495 = vpop.f32.mrb[0].mxu0
    %496 = vmatprep.mubr.f32.mxu0 0.0
    %497 = vmatmul.mubr.f32.gmra.mrb[0].mxu0 %v393
    %v498 = vpop.f32.mrb[0].mxu0
    %v499 = vadd.f32 %v74, %v498
    %v500 = vpop.f32.mrb[0].mxu0
    %501 = vmatprep.mubr.f32.mxu0 0.0
    %502 = vmatmul.mubr.f32.gmra.mrb[0].mxu0 %v396
    %v503 = vpop.f32.mrb[0].mxu0
    %v504 = vadd.f32 %v75, %v503
    %v505 = vpop.f32.mrb[0].mxu0
    %506 = vmatprep.mubr.f32.mxu0 0.0
    %507 = vmatmul.mubr.f32.gmra.mrb[0].mxu0 %v399
    %v508 = vpop.f32.mrb[0].mxu0
    %v509 = vadd.f32 %v76, %v508
    %v510 = vpop.f32.mrb[0].mxu0
    %511 = vdwg.mxu0
    %vm512 = vcmask 130048
    %v513 = vsel %vm512, %v474, -inf
    %514 = vmax.xlane.f32.xlu0 %v513
    %v515 = vpop.xlane.xlu0 %514
    %v516 = vsel %vm512, %v479, -inf
    %517 = vmax.xlane.f32.xlu0 %v516
    %v518 = vpop.xlane.xlu0 %517
    %v519 = vsel %vm512, %v484, -inf
    %520 = vmax.xlane.f32.xlu0 %v519
    %v521 = vpop.xlane.xlu0 %520
    %v522 = vsel %vm512, %v489, -inf
    %523 = vmax.xlane.f32.xlu0 %v522
    %v524 = vpop.xlane.xlu0 %523
    %v525 = vsel %vm512, %v494, -inf
    %526 = vmax.xlane.f32.xlu0 %v525
    %v527 = vpop.xlane.xlu0 %526
    %v528 = vsel %vm512, %v499, -inf
    %529 = vmax.xlane.f32.xlu0 %v528
    %v530 = vpop.xlane.xlu0 %529
    %v531 = vsel %vm512, %v504, -inf
    %532 = vmax.xlane.f32.xlu0 %v531
    %v533 = vpop.xlane.xlu0 %532
    %v534 = vsel %vm512, %v509, -inf
    %535 = vmax.xlane.f32.xlu0 %v534
    %v536 = vpop.xlane.xlu0 %535
    %v537 = vsub.f32 %v474, %v515
    %v538 = vsub.f32 %v479, %v518
    %v539 = vsub.f32 %v484, %v521
    %v540 = vsub.f32 %v489, %v524
    %v541 = vsub.f32 %v494, %v527
    %v542 = vsub.f32 %v499, %v530
    %v543 = vsub.f32 %v504, %v533
    %v544 = vsub.f32 %v509, %v536
    %v545 = vmul.f32 %v537, 1.442695
    %v546 = vpow.pop %v545
    %v547 = vmul.f32 %v538, 1.442695
    %v548 = vpow.pop %v547
    %v549 = vmul.f32 %v539, 1.442695
    %v550 = vpow.pop %v549
    %v551 = vmul.f32 %v540, 1.442695
    %v552 = vpow.pop %v551
    %v553 = vmul.f32 %v541, 1.442695
    %v554 = vpow.pop %v553
    %v555 = vmul.f32 %v542, 1.442695
    %v556 = vpow.pop %v555
    %v557 = vmul.f32 %v543, 1.442695
    %v558 = vpow.pop %v557
    %v559 = vmul.f32 %v544, 1.442695
    %v560 = vpow.pop %v559
    %v561 = vsel %vm512, %v546, 0.0
    %562 = vadd.xlane.f32.xlu0 %v561
    %v563 = vpop.xlane.xlu0 %562
    %v564 = vsel %vm512, %v548, 0.0
    %565 = vadd.xlane.f32.xlu0 %v564
    %v566 = vpop.xlane.xlu0 %565
    %v567 = vsel %vm512, %v550, 0.0
    %568 = vadd.xlane.f32.xlu0 %v567
    %v569 = vpop.xlane.xlu0 %568
    %v570 = vsel %vm512, %v552, 0.0
    %571 = vadd.xlane.f32.xlu0 %v570
    %v572 = vpop.xlane.xlu0 %571
    %v573 = vsel %vm512, %v554, 0.0
    %574 = vadd.xlane.f32.xlu0 %v573
    %v575 = vpop.xlane.xlu0 %574
    %v576 = vsel %vm512, %v556, 0.0
    %577 = vadd.xlane.f32.xlu0 %v576
    %v578 = vpop.xlane.xlu0 %577
    %v579 = vsel %vm512, %v558, 0.0
    %580 = vadd.xlane.f32.xlu0 %v579
    %v581 = vpop.xlane.xlu0 %580
    %v582 = vsel %vm512, %v560, 0.0
    %583 = vadd.xlane.f32.xlu0 %v582
    %v584 = vpop.xlane.xlu0 %583
    %v585 = vrcp.pop %v563
    %v586 = vmul.f32 %v546, %v585
    %v587 = vrcp.pop %v566
    %v588 = vmul.f32 %v548, %v587
    %v589 = vrcp.pop %v569
    %v590 = vmul.f32 %v550, %v589
    %v591 = vrcp.pop %v572
    %v592 = vmul.f32 %v552, %v591
    %v593 = vrcp.pop %v575
    %v594 = vmul.f32 %v554, %v593
    %v595 = vrcp.pop %v578
    %v596 = vmul.f32 %v556, %v595
    %v597 = vrcp.pop %v581
    %v598 = vmul.f32 %v558, %v597
    %v599 = vrcp.pop %v584
    %v600 = vmul.f32 %v560, %v599
    %v602 = vsel %vm512, %v586, 0
    %v605 = vsel %vm512, %v588, 0
    %v608 = vsel %vm512, %v590, 0
    %v611 = vsel %vm512, %v592, 0
    %v614 = vsel %vm512, %v594, 0
    %v617 = vsel %vm512, %v596, 0
    %v620 = vsel %vm512, %v598, 0
    %v623 = vsel %vm512, %v600, 0
    %625 = vmatprep.subr.mxu0 0.0
    %626 = vmatpush1.msra.mxu0 %v361
    %627 = vmatprep.subr.mxu0 0.0
    %628 = vmatpush1.msra.mxu0 %v366
    %629 = vmatprep.subr.mxu0 0.0
    %630 = vmatpush1.msra.mxu0 0.0
    %631 = vmatprep.subr.mxu0 0.0
    %632 = vmatpush1.msra.mxu0 0.0
    %633 = vmatprep.subr.mxu0 0.0
    %634 = vmatpush1.msra.mxu0 0.0
    %635 = vmatprep.subr.mxu0 0.0
    %636 = vmatpush1.msra.mxu0 0.0
    %637 = vmatprep.subr.mxu0 0.0
    %638 = vmatpush1.msra.mxu0 0.0
    %639 = vmatprep.subr.mxu0 0.0
    %640 = vmatpush1.msra.mxu0 0.0
    %641 = vmatprep.subr.mxu0 0.0
    %642 = vmatpush1.msra.mxu0 0.0
    %643 = vmatprep.subr.mxu0 0.0
    %644 = vmatpush1.msra.mxu0 0.0
    %645 = vmatprep.subr.mxu0 0.0
    %646 = vmatpush1.msra.mxu0 0.0
    %647 = vmatprep.subr.mxu0 0.0
    %648 = vmatpush1.msra.mxu0 0.0
    %649 = vmatprep.subr.mxu0 0.0
    %650 = vmatpush1.msra.mxu0 0.0
    %651 = vmatprep.subr.mxu0 0.0
    %652 = vmatpush1.msra.mxu0 0.0
    %653 = vmatprep.subr.mxu0 0.0
    %654 = vmatpush1.msra.mxu0 0.0
    %655 = vmatprep.subr.mxu0 0.0
    %656 = vmatpush1.msra.mxu0 0.0
    %657 = vmatprep.subr.mxu0 0.0
    %658 = vmatpush1.msra.mxu0 0.0
    %659 = vmatprep.subr.mxu0 0.0
    %660 = vmatpush1.msra.mxu0 0.0
    %661 = vmatprep.subr.mxu0 0.0
    %662 = vmatpush1.msra.mxu0 0.0
    %663 = vmatprep.subr.mxu0 0.0
    %664 = vmatpush1.msra.mxu0 0.0
    %665 = vmatprep.subr.mxu0 0.0
    %666 = vmatpush1.msra.mxu0 0.0
    %667 = vmatprep.subr.mxu0 0.0
    %668 = vmatpush1.msra.mxu0 0.0
    %669 = vmatprep.subr.mxu0 0.0
    %670 = vmatpush1.msra.mxu0 0.0
    %671 = vmatprep.subr.mxu0 0.0
    %672 = vmatpush1.msra.mxu0 0.0
    %673 = vmatprep.subr.mxu0 0.0
    %674 = vmatpush1.msra.mxu0 0.0
    %675 = vmatprep.subr.mxu0 0.0
    %676 = vmatpush1.msra.mxu0 0.0
    %677 = vmatprep.subr.mxu0 0.0
    %678 = vmatpush1.msra.mxu0 0.0
    %679 = vmatprep.subr.mxu0 0.0
    %680 = vmatpush1.msra.mxu0 0.0
    %681 = vmatprep.subr.mxu0 0.0
    %682 = vmatpush1.msra.mxu0 0.0
    %683 = vmatprep.subr.mxu0 0.0
    %684 = vmatpush1.msra.mxu0 0.0
    %685 = vmatprep.subr.mxu0 0.0
    %686 = vmatpush1.msra.mxu0 0.0
    %687 = vmatprep.subr.mxu0 0.0
    %688 = vmatpush1.msra.mxu0 0.0
    %689 = vmatprep.mubr.f32.mxu0 0.0
    %690 = vmatmul.mubr.f32.gmra.mrb[0].mxu0 %v602
    %v691 = vpop.f32.mrb[0].mxu0
    %v692 = vadd.f32 0.0, %v691
    %v693 = vpop.f32.mrb[0].mxu0
    %694 = vmatprep.mubr.f32.mxu0 0.0
    %695 = vmatmul.mubr.f32.gmra.mrb[0].mxu0 %v605
    %v696 = vpop.f32.mrb[0].mxu0
    %v697 = vadd.f32 0.0, %v696
    %v698 = vpop.f32.mrb[0].mxu0
    %699 = vmatprep.mubr.f32.mxu0 0.0
    %700 = vmatmul.mubr.f32.gmra.mrb[0].mxu0 %v608
    %v701 = vpop.f32.mrb[0].mxu0
    %v702 = vadd.f32 0.0, %v701
    %v703 = vpop.f32.mrb[0].mxu0
    %704 = vmatprep.mubr.f32.mxu0 0.0
    %705 = vmatmul.mubr.f32.gmra.mrb[0].mxu0 %v611
    %v706 = vpop.f32.mrb[0].mxu0
    %v707 = vadd.f32 0.0, %v706
    %v708 = vpop.f32.mrb[0].mxu0
    %709 = vmatprep.mubr.f32.mxu0 0.0
    %710 = vmatmul.mubr.f32.gmra.mrb[0].mxu0 %v614
    %v711 = vpop.f32.mrb[0].mxu0
    %v712 = vadd.f32 0.0, %v711
    %v713 = vpop.f32.mrb[0].mxu0
    %714 = vmatprep.mubr.f32.mxu0 0.0
    %715 = vmatmul.mubr.f32.gmra.mrb[0].mxu0 %v617
    %v716 = vpop.f32.mrb[0].mxu0
    %v717 = vadd.f32 0.0, %v716
    %v718 = vpop.f32.mrb[0].mxu0
    %719 = vmatprep.mubr.f32.mxu0 0.0
    %720 = vmatmul.mubr.f32.gmra.mrb[0].mxu0 %v620
    %v721 = vpop.f32.mrb[0].mxu0
    %v722 = vadd.f32 0.0, %v721
    %v723 = vpop.f32.mrb[0].mxu0
    %724 = vmatprep.mubr.f32.mxu0 0.0
    %725 = vmatmul.mubr.f32.gmra.mrb[0].mxu0 %v623
    %v726 = vpop.f32.mrb[0].mxu0
    %v727 = vadd.f32 0.0, %v726
    %v728 = vpop.f32.mrb[0].mxu0
    %729 = vdwg.mxu0
    %732 = vrot.lane.b32.xlu0 %v702, 32
    %v733 = vpop.permute.xlu0 %732
    %734 = vrot.lane.b32.xlu0 %v707, 32
    %v735 = vpop.permute.xlu0 %734
    %740 = vrot.lane.b32.xlu0 %v712, 64
    %v741 = vpop.permute.xlu0 %740
    %742 = vrot.lane.b32.xlu0 %v717, 64
    %v743 = vpop.permute.xlu0 %742
    %748 = vrot.lane.b32.xlu0 %v722, 96
    %v749 = vpop.permute.xlu0 %748
    %750 = vrot.lane.b32.xlu0 %v727, 96
    %v751 = vpop.permute.xlu0 %750
    %v754 = vsel %vm90, %v692, %v733
    %v755 = vsel %vm90, %v697, %v735
    %vm756 = vcmask 523264
    %v757 = vsel %vm756, %v754, %v741
    %v758 = vsel %vm756, %v755, %v743
    %vm759 = vcmask 785408
    %v760 = vsel %vm759, %v757, %v749
    %v761 = vsel %vm759, %v758, %v751
    %v762 = vlaneseq
    %v763 = vshrl.u32 %v762, 7
    %v764 = vsub.s32 0, %v763
    %v765 = vrot.slane %v85, %v764
    %766 = vmatprep.subr.mxu0 0.0
    %767 = vmatpush1.msra.mxu0 %v29
    %768 = vmatprep.subr.mxu0 0.0
    %769 = vmatpush1.msra.mxu0 %v30
    %770 = vmatprep.subr.mxu0 0.0
    %771 = vmatpush1.msra.mxu0 %v31
    %772 = vmatprep.subr.mxu0 0.0
    %773 = vmatpush1.msra.mxu0 %v32
    %774 = vmatprep.subr.mxu0 0.0
    %775 = vmatpush1.msra.mxu0 %v33
    %776 = vmatprep.subr.mxu0 0.0
    %777 = vmatpush1.msra.mxu0 %v34
    %778 = vmatprep.subr.mxu0 0.0
    %779 = vmatpush1.msra.mxu0 %v35
    %780 = vmatprep.subr.mxu0 0.0
    %781 = vmatpush1.msra.mxu0 %v36
    %782 = vmatprep.subr.mxu0 0.0
    %783 = vmatpush1.msra.mxu0 %v37
    %784 = vmatprep.subr.mxu0 0.0
    %785 = vmatpush1.msra.mxu0 %v38
    %786 = vmatprep.subr.mxu0 0.0
    %787 = vmatpush1.msra.mxu0 %v39
    %788 = vmatprep.subr.mxu0 0.0
    %789 = vmatpush1.msra.mxu0 %v40
    %790 = vmatprep.subr.mxu0 0.0
    %791 = vmatpush1.msra.mxu0 %v41
    %792 = vmatprep.subr.mxu0 0.0
    %793 = vmatpush1.msra.mxu0 %v42
    %794 = vmatprep.subr.mxu0 0.0
    %795 = vmatpush1.msra.mxu0 %v43
    %796 = vmatprep.subr.mxu0 0.0
    %797 = vmatpush1.msra.mxu0 %v44
    %798 = vmatprep.subr.mxu0 0.0
    %799 = vmatpush1.msra.mxu0 0.0
    %800 = vmatprep.subr.mxu0 0.0
    %801 = vmatpush1.msra.mxu0 0.0
    %802 = vmatprep.subr.mxu0 0.0
    %803 = vmatpush1.msra.mxu0 0.0
    %804 = vmatprep.subr.mxu0 0.0
    %805 = vmatpush1.msra.mxu0 0.0
    %806 = vmatprep.subr.mxu0 0.0
    %807 = vmatpush1.msra.mxu0 0.0
    %808 = vmatprep.subr.mxu0 0.0
    %809 = vmatpush1.msra.mxu0 0.0
    %810 = vmatprep.subr.mxu0 0.0
    %811 = vmatpush1.msra.mxu0 0.0
    %812 = vmatprep.subr.mxu0 0.0
    %813 = vmatpush1.msra.mxu0 0.0
    %814 = vmatprep.subr.mxu0 0.0
    %815 = vmatpush1.msra.mxu0 0.0
    %816 = vmatprep.subr.mxu0 0.0
    %817 = vmatpush1.msra.mxu0 0.0
    %818 = vmatprep.subr.mxu0 0.0
    %819 = vmatpush1.msra.mxu0 0.0
    %820 = vmatprep.subr.mxu0 0.0
    %821 = vmatpush1.msra.mxu0 0.0
    %822 = vmatprep.subr.mxu0 0.0
    %823 = vmatpush1.msra.mxu0 0.0
    %824 = vmatprep.subr.mxu0 0.0
    %825 = vmatpush1.msra.mxu0 0.0
    %826 = vmatprep.subr.mxu0 0.0
    %827 = vmatpush1.msra.mxu0 0.0
    %828 = vmatprep.subr.mxu0 0.0
    %829 = vmatpush1.msra.mxu0 0.0
    %830 = vmatprep.mubr.f32.mxu0 0.0
    %831 = vmatmul.mubr.f32.gmra.mrb[0].mxu0 %v760
    %v832 = vpop.f32.mrb[0].mxu0
    %v833 = vadd.f32 %v765, %v832
    %v834 = vpop.f32.mrb[0].mxu0
    %835 = vmatprep.mubr.f32.mxu0 0.0
    %836 = vmatmul.mubr.f32.gmra.mrb[0].mxu0 %v761
    %v837 = vpop.f32.mrb[0].mxu0
    %v838 = vadd.f32 %v765, %v837
    %v839 = vpop.f32.mrb[0].mxu0
    %840 = vdwg.mxu0
    %v841 = vadd.f32 %v15, %v833
    %v842 = vadd.f32 %v16, %v838
    %v843 = vsel %vm90, %v841, 0.0
    %844 = vadd.xlane.f32.xlu0 %v843
    %v845 = vpop.xlane.xlu0 %844
    %v846 = vsel %vm90, %v842, 0.0
    %847 = vadd.xlane.f32.xlu0 %v846
    %v848 = vpop.xlane.xlu0 %847
    %v849 = vmul.f32 %v845, %v97
    %v850 = vmul.f32 %v848, %v97
    %v851 = vsub.f32 %v841, %v849
    %v852 = vsub.f32 %v842, %v850
    %v853 = vmul.f32 %v851, %v851
    %v854 = vmul.f32 %v852, %v852
    %v855 = vsel %vm90, %v853, 0.0
    %856 = vadd.xlane.f32.xlu0 %v855
    %v857 = vpop.xlane.xlu0 %856
    %v858 = vsel %vm90, %v854, 0.0
    %859 = vadd.xlane.f32.xlu0 %v858
    %v860 = vpop.xlane.xlu0 %859
    %v861 = vmul.f32 %v857, %v97
    %v862 = vmul.f32 %v860, %v97
    %v863 = vadd.f32 %v861, 1e-05
    %v864 = vadd.f32 %v862, 1e-05
    %v865 = vrsqrt.pop %v863
    %v866 = vrsqrt.pop %v864
    %v867 = vmul.f32 %v851, %v865
    %v868 = vmul.f32 %v852, %v866
    %v869 = vlaneseq
    %v870 = vshrl.u32 %v869, 7
    %v871 = vsub.s32 0, %v870
    %v872 = vrot.slane %v86, %v871
    %v873 = vmul.f32 %v867, %v872
    %v874 = vmul.f32 %v868, %v872
    %v875 = vlaneseq
    %v876 = vshrl.u32 %v875, 7
    %v877 = vsub.s32 0, %v876
    %v878 = vrot.slane %v87, %v877
    %v879 = vadd.f32 %v873, %v878
    %v880 = vadd.f32 %v874, %v878
    %v881 = vlaneseq
    %v882 = vshrl.u32 %v881, 7
    %v883 = vsub.s32 0, %v882
    %v884 = vrot.slane %v88, %v883
    %v886 = vsel %vm90, %v879, 0
    %v889 = vsel %vm90, %v880, 0
    %891 = vmatprep.subr.mxu0 0.0
    %892 = vmatpush1.msra.mxu0 %v77
    %893 = vmatprep.subr.mxu0 0.0
    %894 = vmatpush1.msra.mxu0 %v78
    %895 = vmatprep.subr.mxu0 0.0
    %896 = vmatpush1.msra.mxu0 %v79
    %897 = vmatprep.subr.mxu0 0.0
    %898 = vmatpush1.msra.mxu0 %v80
    %899 = vmatprep.subr.mxu0 0.0
    %900 = vmatpush1.msra.mxu0 0.0
    %901 = vmatprep.subr.mxu0 0.0
    %902 = vmatpush1.msra.mxu0 0.0
    %903 = vmatprep.subr.mxu0 0.0
    %904 = vmatpush1.msra.mxu0 0.0
    %905 = vmatprep.subr.mxu0 0.0
    %906 = vmatpush1.msra.mxu0 0.0
    %907 = vmatprep.subr.mxu0 0.0
    %908 = vmatpush1.msra.mxu0 0.0
    %909 = vmatprep.subr.mxu0 0.0
    %910 = vmatpush1.msra.mxu0 0.0
    %911 = vmatprep.subr.mxu0 0.0
    %912 = vmatpush1.msra.mxu0 0.0
    %913 = vmatprep.subr.mxu0 0.0
    %914 = vmatpush1.msra.mxu0 0.0
    %915 = vmatprep.subr.mxu0 0.0
    %916 = vmatpush1.msra.mxu0 0.0
    %917 = vmatprep.subr.mxu0 0.0
    %918 = vmatpush1.msra.mxu0 0.0
    %919 = vmatprep.subr.mxu0 0.0
    %920 = vmatpush1.msra.mxu0 0.0
    %921 = vmatprep.subr.mxu0 0.0
    %922 = vmatpush1.msra.mxu0 0.0
    %923 = vmatprep.subr.mxu0 0.0
    %924 = vmatpush1.msra.mxu0 0.0
    %925 = vmatprep.subr.mxu0 0.0
    %926 = vmatpush1.msra.mxu0 0.0
    %927 = vmatprep.subr.mxu0 0.0
    %928 = vmatpush1.msra.mxu0 0.0
    %929 = vmatprep.subr.mxu0 0.0
    %930 = vmatpush1.msra.mxu0 0.0
    %931 = vmatprep.subr.mxu0 0.0
    %932 = vmatpush1.msra.mxu0 0.0
    %933 = vmatprep.subr.mxu0 0.0
    %934 = vmatpush1.msra.mxu0 0.0
    %935 = vmatprep.subr.mxu0 0.0
    %936 = vmatpush1.msra.mxu0 0.0
    %937 = vmatprep.subr.mxu0 0.0
    %938 = vmatpush1.msra.mxu0 0.0
    %939 = vmatprep.subr.mxu0 0.0
    %940 = vmatpush1.msra.mxu0 0.0
    %941 = vmatprep.subr.mxu0 0.0
    %942 = vmatpush1.msra.mxu0 0.0
    %943 = vmatprep.subr.mxu0 0.0
    %944 = vmatpush1.msra.mxu0 0.0
    %945 = vmatprep.subr.mxu0 0.0
    %946 = vmatpush1.msra.mxu0 0.0
    %947 = vmatprep.subr.mxu0 0.0
    %948 = vmatpush1.msra.mxu0 0.0
    %949 = vmatprep.subr.mxu0 0.0
    %950 = vmatpush1.msra.mxu0 0.0
    %951 = vmatprep.subr.mxu0 0.0
    %952 = vmatpush1.msra.mxu0 0.0
    %953 = vmatprep.subr.mxu0 0.0
    %954 = vmatpush1.msra.mxu0 0.0
    %955 = vmatprep.mubr.f32.mxu0 0.0
    %956 = vmatmul.mubr.f32.gmra.mrb[0].mxu0 %v886
    %v957 = vpop.f32.mrb[0].mxu0
    %v958 = vadd.f32 %v884, %v957
    %v959 = vpop.f32.mrb[0].mxu0
    %960 = vmatprep.mubr.f32.mxu0 0.0
    %961 = vmatmul.mubr.f32.gmra.mrb[0].mxu0 %v889
    %v962 = vpop.f32.mrb[0].mxu0
    %v963 = vadd.f32 %v884, %v962
    %v964 = vpop.f32.mrb[0].mxu0
    %965 = vdwg.mxu0
    %v966 = vmul.f32 %v958, 0.5
    %v967 = vmul.f32 %v963, 0.5
    %v968 = vmul.f32 %v958, 0.70710677
    %v969 = vmul.f32 %v963, 0.70710677
    %v970 = vand.u32 2147483647, %v968
    %v971 = vand.u32 2147483647, %v969
    %v972 = vmul.f32 %v970, 0.3275911
    %v973 = vmul.f32 %v971, 0.3275911
    %v974 = vadd.f32 %v972, 1.0
    %v975 = vadd.f32 %v973, 1.0
    %v976 = vrcp.pop %v974
    %v977 = vmul.f32 1.0, %v976
    %v978 = vrcp.pop %v975
    %v979 = vmul.f32 1.0, %v978
    %v980 = vmul.f32 %v977, 1.0614054
    %v981 = vmul.f32 %v979, 1.0614054
    %v982 = vadd.f32 %v980, -1.4531521
    %v983 = vadd.f32 %v981, -1.4531521
    %v984 = vmul.f32 %v982, %v977
    %v985 = vmul.f32 %v983, %v979
    %v986 = vadd.f32 %v984, 1.4214138
    %v987 = vadd.f32 %v985, 1.4214138
    %v988 = vmul.f32 %v986, %v977
    %v989 = vmul.f32 %v987, %v979
    %v990 = vadd.f32 %v988, -0.28449672
    %v991 = vadd.f32 %v989, -0.28449672
    %v992 = vmul.f32 %v990, %v977
    %v993 = vmul.f32 %v991, %v979
    %v994 = vadd.f32 %v992, 0.2548296
    %v995 = vadd.f32 %v993, 0.2548296
    %v996 = vmul.f32 %v994, %v977
    %v997 = vmul.f32 %v995, %v979
    %v998 = vsub.f32 0.0, %v970
    %v999 = vsub.f32 0.0, %v971
    %v1000 = vmul.f32 %v998, %v970
    %v1001 = vmul.f32 %v999, %v971
    %v1002 = vmul.f32 %v1000, 1.442695
    %v1003 = vpow.pop %v1002
    %v1004 = vmul.f32 %v1001, 1.442695
    %v1005 = vpow.pop %v1004
    %v1006 = vmul.f32 %v996, %v1003
    %v1007 = vmul.f32 %v997, %v1005
    %v1008 = vsub.f32 1.0, %v1006
    %v1009 = vsub.f32 1.0, %v1007
    %vm1010 = vcmp.ge.f32.partialorder %v968, 0.0
    %vm1011 = vcmp.ge.f32.partialorder %v969, 0.0
    %v1012 = vsub.f32 0.0, %v1008
    %v1013 = vsub.f32 0.0, %v1009
    %v1014 = vsel %vm1010, %v1008, %v1012
    %v1015 = vsel %vm1011, %v1009, %v1013
    %v1016 = vadd.f32 %v1014, 1.0
    %v1017 = vadd.f32 %v1015, 1.0
    %v1018 = vmul.f32 %v966, %v1016
    %v1019 = vmul.f32 %v967, %v1017
    %v1020 = vlaneseq
    %v1021 = vshrl.u32 %v1020, 7
    %v1022 = vsub.s32 0, %v1021
    %v1023 = vrot.slane %v89, %v1022
    %1024 = vmatprep.subr.mxu0 0.0
    %1025 = vmatpush1.msra.mxu0 %v45
    %1026 = vmatprep.subr.mxu0 0.0
    %1027 = vmatpush1.msra.mxu0 %v46
    %1028 = vmatprep.subr.mxu0 0.0
    %1029 = vmatpush1.msra.mxu0 %v47
    %1030 = vmatprep.subr.mxu0 0.0
    %1031 = vmatpush1.msra.mxu0 %v48
    %1032 = vmatprep.subr.mxu0 0.0
    %1033 = vmatpush1.msra.mxu0 %v49
    %1034 = vmatprep.subr.mxu0 0.0
    %1035 = vmatpush1.msra.mxu0 %v50
    %1036 = vmatprep.subr.mxu0 0.0
    %1037 = vmatpush1.msra.mxu0 %v51
    %1038 = vmatprep.subr.mxu0 0.0
    %1039 = vmatpush1.msra.mxu0 %v52
    %1040 = vmatprep.subr.mxu0 0.0
    %1041 = vmatpush1.msra.mxu0 %v53
    %1042 = vmatprep.subr.mxu0 0.0
    %1043 = vmatpush1.msra.mxu0 %v54
    %1044 = vmatprep.subr.mxu0 0.0
    %1045 = vmatpush1.msra.mxu0 %v55
    %1046 = vmatprep.subr.mxu0 0.0
    %1047 = vmatpush1.msra.mxu0 %v56
    %1048 = vmatprep.subr.mxu0 0.0
    %1049 = vmatpush1.msra.mxu0 %v57
    %1050 = vmatprep.subr.mxu0 0.0
    %1051 = vmatpush1.msra.mxu0 %v58
    %1052 = vmatprep.subr.mxu0 0.0
    %1053 = vmatpush1.msra.mxu0 %v59
    %1054 = vmatprep.subr.mxu0 0.0
    %1055 = vmatpush1.msra.mxu0 %v60
    %1056 = vmatprep.subr.mxu0 0.0
    %1057 = vmatpush1.msra.mxu0 0.0
    %1058 = vmatprep.subr.mxu0 0.0
    %1059 = vmatpush1.msra.mxu0 0.0
    %1060 = vmatprep.subr.mxu0 0.0
    %1061 = vmatpush1.msra.mxu0 0.0
    %1062 = vmatprep.subr.mxu0 0.0
    %1063 = vmatpush1.msra.mxu0 0.0
    %1064 = vmatprep.subr.mxu0 0.0
    %1065 = vmatpush1.msra.mxu0 0.0
    %1066 = vmatprep.subr.mxu0 0.0
    %1067 = vmatpush1.msra.mxu0 0.0
    %1068 = vmatprep.subr.mxu0 0.0
    %1069 = vmatpush1.msra.mxu0 0.0
    %1070 = vmatprep.subr.mxu0 0.0
    %1071 = vmatpush1.msra.mxu0 0.0
    %1072 = vmatprep.subr.mxu0 0.0
    %1073 = vmatpush1.msra.mxu0 0.0
    %1074 = vmatprep.subr.mxu0 0.0
    %1075 = vmatpush1.msra.mxu0 0.0
    %1076 = vmatprep.subr.mxu0 0.0
    %1077 = vmatpush1.msra.mxu0 0.0
    %1078 = vmatprep.subr.mxu0 0.0
    %1079 = vmatpush1.msra.mxu0 0.0
    %1080 = vmatprep.subr.mxu0 0.0
    %1081 = vmatpush1.msra.mxu0 0.0
    %1082 = vmatprep.subr.mxu0 0.0
    %1083 = vmatpush1.msra.mxu0 0.0
    %1084 = vmatprep.subr.mxu0 0.0
    %1085 = vmatpush1.msra.mxu0 0.0
    %1086 = vmatprep.subr.mxu0 0.0
    %1087 = vmatpush1.msra.mxu0 0.0
    %1088 = vmatprep.mubr.f32.mxu0 0.0
    %1089 = vmatmul.mubr.f32.gmra.mrb[0].mxu0 %v1018
    %v1090 = vpop.f32.mrb[0].mxu0
    %v1091 = vadd.f32 %v1023, %v1090
    %v1092 = vpop.f32.mrb[0].mxu0
    %1093 = vmatprep.mubr.f32.mxu0 0.0
    %1094 = vmatmul.mubr.f32.gmra.mrb[0].mxu0 %v1019
    %v1095 = vpop.f32.mrb[0].mxu0
    %v1096 = vadd.f32 %v1023, %v1095
    %v1097 = vpop.f32.mrb[0].mxu0
    %1098 = vdwg.mxu0
    %v1099 = vadd.f32 %v841, %v1091
    %v1100 = vadd.f32 %v842, %v1096
    %1101 = vst.msk [vmem:[#allocation2] sm:$0xff] %vm90, %v1099
    %1102 = vst.msk [vmem:[#allocation2 + $0x8] sm:$0xff] %vm90, %v1100
    // Predicated region
    $region14: #{block_forward.1} parent=1 // pred_check
      _
    $region15: #{block_forward.1} parent=1 // pred_check_branch
      %1104 = sbr.rel (0) target = $region17
    $region16: #{block_forward.1} parent=1 // pred_region
      %s1106 = ssub.s32 256, 256
      %1107 = vsyncadd [#allocation3], %s1106
      %s1108 = sshll.u32 [#allocation2], 4
      %s1109 = int_to_ptr.vmem [resolvable:$true] %s1108
      %1114 = dma.vmem_to_hbm [thread:$0]  %s1109, 256, %s3, [#allocation3], 128, 128, 8
    $region17: #{block_forward.1} parent=1 // pred_fallthru
      _
    // Predicated region
    $region18: #{block_forward.1} parent=1 // pred_check
      _
    $region19: #{block_forward.1} parent=1 // pred_check_branch
      %1116 = sbr.rel (0) target = $region21
    $region20: #{block_forward.1} parent=1 // pred_region
      %1117 = dma.done [#allocation3], 256
    $region21: #{block_forward.1} parent=1 // pred_fallthru
      _
    %1118 = vsyncpa [#allocation3], 1

</llo_original>
